<compile_context>
chip_gen: v5e
topology: v5e:2x2
jax: 0.10.0
libtpu: 0.0.40
codegen_flags: <defaults>
</compile_context>

<pallas_src>
import math

import numpy as np

import jax
import jax.numpy as jnp
from jax.experimental import pallas as pl
from jax.experimental.pallas import tpu as pltpu

# ---------------------------------------------------------------------------
# Model hyper-parameters (consistent with the module __init__)
# ---------------------------------------------------------------------------
ARTICLE_EMB_SIZE = 24
CAT_EMB_SIZE = 8
PREMIUM = 2
SENTIMENTS = 3
TEMPORAL = 5
WEEKDAYS = 7
HOURS = 24
DIMS = 32
DROPOUT = 0.1  # inactive in eval mode

F_IN = ARTICLE_EMB_SIZE + CAT_EMB_SIZE            # 32
PACK = 4                                          # tokens packed per lane-dense row
assert PACK * F_IN == 128 and PACK * DIMS == 128

N_TABLES = 5
TABLE_SIZES = (PREMIUM, SENTIMENTS, TEMPORAL, WEEKDAYS, HOURS)
TABLE_OFFS = (0,
              PREMIUM,
              PREMIUM + SENTIMENTS,
              PREMIUM + SENTIMENTS + TEMPORAL,
              PREMIUM + SENTIMENTS + TEMPORAL + WEEKDAYS)
TAB_ROWS = sum(TABLE_SIZES)                       # 41
TAB_PAD = 64                                      # per-token table block (lane aligned)
TAB_BD = TAB_PAD * PACK                           # 256  (whole vregs everywhere)
IDX_COLS = N_TABLES * PACK                        # 20
IDX_PAD = 24                                      # sublane-aligned K for MXU scatter
# Offset index values (< TAB_BD = 256) must be exactly representable in a
# bf16 MXU pass for the compare-based one-hot to be exact.
assert TAB_BD <= 256

MAX_TM4 = 2048   # packed-row tile cap (= 8192 tokens / step)

BATCH = 2
SEQ = 8

_SELU_ALPHA = 1.6732632423543772848170429916717
_SELU_SCALE = 1.0507009873554804934193349852946


def _selu(x):
    return _SELU_SCALE * jnp.where(x > 0, x, _SELU_ALPHA * (jnp.exp(x) - 1.0))


def _round_up(x, m):
    return (x + m - 1) // m * m


def _cdiv(a, b):
    return -(-a // b)


def _block_diag(w, pack=PACK):
    """(a, b) -> (pack*a, pack*b) block-diagonal expansion."""
    eye = jnp.eye(pack, dtype=w.dtype)
    a, b = w.shape
    return jnp.einsum("pq,ab->paqb", eye, w).reshape(pack * a, pack * b)


def _build_selector_np():
    """(IDX_PAD, TAB_BD) 0/1 matrix: row j=(token p, table t) is 1 on the
    lane range that table occupies inside token p's TAB_PAD-lane block."""
    sel = np.zeros((IDX_PAD, TAB_BD), np.float32)
    for p in range(PACK):
        for t in range(N_TABLES):
            lo = p * TAB_PAD + TABLE_OFFS[t]
            sel[p * N_TABLES + t, lo:lo + TABLE_SIZES[t]] = 1.0
    return sel


# ---------------------------------------------------------------------------
# Pallas kernel: two block-diagonal matmuls + SELU + MXU-scatter table gather
# ---------------------------------------------------------------------------
def _article_emb_kernel(x_ref, idx_ref, w1_ref, b1_ref, w2_ref, b2_ref,
                        sel_ref, lane_ref, tab_ref, out_ref):
    # x: (TM4, 128) = PACK tokens packed per row; weights are block-diagonal,
    # so the packed (lane-dense) layout is preserved through both Linears.
    x = x_ref[...]
    h = jnp.dot(x, w1_ref[...], preferred_element_type=jnp.float32) + b1_ref[...]
    h = _selu(h)
    # TODO(synk): training-mode dropout omitted — eval semantics only.
    y = jnp.dot(h, w2_ref[...], preferred_element_type=jnp.float32) + b2_ref[...]

    # MXU scatter: one tiny matmul spreads each (pre-offset) index value onto
    # the lane range of its (token, table) block; one compare against the
    # constant lane-id row and one cast build the multi-hot.  All quantities
    # are small integers (< 256), so this is exact.
    idx_f = idx_ref[...].astype(jnp.float32)                      # (TM4, 24)
    val = jnp.dot(idx_f, sel_ref[...],
                  preferred_element_type=jnp.float32)             # (TM4, 256)
    mh = (val == lane_ref[...]).astype(jnp.float32)               # (TM4, 256)
    # Block-diagonal fused table -> packed per-token sums of 5 embeddings.
    y = y + jnp.dot(mh, tab_ref[...], preferred_element_type=jnp.float32)

    out_ref[...] = y


def _article_emb_pallas(x_packed, idx_packed, pk, tm4):
    n_pack = x_packed.shape[0]
    row = pl.BlockSpec((tm4, PACK * DIMS), lambda i: (i, 0))
    row_idx = pl.BlockSpec((tm4, IDX_PAD), lambda i: (i, 0))
    full = lambda a: pl.BlockSpec(a.shape, lambda i: (0, 0))

    return pl.pallas_call(
        _article_emb_kernel,
        out_shape=jax.ShapeDtypeStruct((n_pack, PACK * DIMS), jnp.float32),
        grid_spec=pltpu.PrefetchScalarGridSpec(
            num_scalar_prefetch=0,
            grid=(n_pack // tm4,),
            in_specs=[
                row,                         # packed activations (lane-dense)
                row_idx,                     # packed, pre-offset int32 indices
                full(pk["w1_bd"]), full(pk["b1"]),
                full(pk["w2_bd"]), full(pk["b2"]),
                full(pk["sel"]), full(pk["lane"]),
                full(pk["tab_bd"]),          # fused block-diagonal table
            ],
            out_specs=row,                   # 128-wide output -> unmasked stores
        ),
        compiler_params=pltpu.CompilerParams(
            dimension_semantics=("parallel",),
            vmem_limit_bytes=48 * 1024 * 1024),
    )(x_packed, idx_packed, pk["w1_bd"], pk["b1"], pk["w2_bd"], pk["b2"],
      pk["sel"], pk["lane"], pk["tab_bd"])


# ---------------------------------------------------------------------------
# Parameter init (deterministic, synthetic) + one-time constant packing
# ---------------------------------------------------------------------------
def init_params(key):
    ks = jax.random.split(key, 9)
    scale1 = 1.0 / jnp.sqrt(F_IN)
    scale2 = 1.0 / jnp.sqrt(DIMS)
    return {
        "w1": jax.random.uniform(ks[0], (F_IN, DIMS), jnp.float32, -scale1, scale1),
        "b1": jax.random.uniform(ks[1], (1, DIMS), jnp.float32, -scale1, scale1),
        "w2": jax.random.uniform(ks[2], (DIMS, DIMS), jnp.float32, -scale2, scale2),
        "b2": jax.random.uniform(ks[3], (1, DIMS), jnp.float32, -scale2, scale2),
        "premium_embs": jax.random.normal(ks[4], (PREMIUM, DIMS), jnp.float32),
        "sentiment_embs": jax.random.normal(ks[5], (SENTIMENTS, DIMS), jnp.float32),
        "temporal_embs": jax.random.normal(ks[6], (TEMPORAL, DIMS), jnp.float32),
        "weekday_embs": jax.random.normal(ks[7], (WEEKDAYS, DIMS), jnp.float32),
        "hour_embs": jax.random.normal(ks[8], (HOURS, DIMS), jnp.float32),
    }


def pack_params(params):
    """One-time packing of all kernel constants (hoisted out of the forward)."""
    tab = jnp.concatenate([params["premium_embs"], params["sentiment_embs"],
                           params["temporal_embs"], params["weekday_embs"],
                           params["hour_embs"]], axis=0)        # (41, 32)
    tab = jnp.pad(tab, ((0, TAB_PAD - TAB_ROWS), (0, 0)))       # (64, 32)
    return {
        "w1_bd": _block_diag(params["w1"]),                     # (128, 128)
        "w2_bd": _block_diag(params["w2"]),                     # (128, 128)
        "b1": jnp.tile(params["b1"].reshape(1, DIMS), (1, PACK)),   # (1, 128)
        "b2": jnp.tile(params["b2"].reshape(1, DIMS), (1, PACK)),   # (1, 128)
        "tab_bd": _block_diag(tab),                             # (256, 128)
        "sel": jnp.asarray(_build_selector_np()),               # (24, 256)
        "lane": jnp.arange(TAB_BD, dtype=jnp.float32).reshape(1, TAB_BD),
    }


# ---------------------------------------------------------------------------
# Forward wrapper (mirrors ArticleEmbedding.forward, eval mode)
# ---------------------------------------------------------------------------
@jax.jit
def article_embedding_forward(packed, article, temporal, weekdays, hours):
    embs, cat_embs, premium, sentiment, mask = article
    lead = embs.shape[:-1]
    n = math.prod(lead)

    # TODO(synk): xcat concat/pad materializes an (n,128) copy in HBM; keep
    # inputs pre-concatenated upstream if the profile shows it isn't fused.
    xcat = jnp.concatenate([embs, cat_embs], axis=-1).reshape(n, F_IN)

    # Fuse the 5 index streams (offsets into the combined per-token table).
    idx = jnp.stack(
        [premium.reshape(n) + TABLE_OFFS[0],
         sentiment.reshape(n) + TABLE_OFFS[1],
         temporal.reshape(n) + TABLE_OFFS[2],
         weekdays.reshape(n) + TABLE_OFFS[3],
         hours.reshape(n) + TABLE_OFFS[4]], axis=-1).astype(jnp.int32)  # (n, 5)

    # Tile selection: one step for tiny problems; otherwise >=2 grid steps
    # (so the "parallel" axis shards across v7x's 2 TensorCores), with tiles
    # balanced across steps and capped at MAX_TM4 packed rows.
    n_pack_min = _cdiv(n, PACK)
    if n_pack_min <= 64:
        steps = 1
    else:
        steps = max(2, _cdiv(n_pack_min, MAX_TM4))
    tm4 = max(8, _round_up(_cdiv(n_pack_min, steps), 8))
    n_pack = tm4 * steps
    n_pad = n_pack * PACK

    if n_pad != n:                       # pad rows; sliced off after the kernel
        xcat = jnp.pad(xcat, ((0, n_pad - n), (0, 0)))
        idx = jnp.pad(idx, ((0, n_pad - n), (0, 0)))

    # Lane-dense packing: PACK tokens per row, 128-wide last dim.
    x_packed = xcat.reshape(n_pack, PACK * F_IN)
    tok_off = (jnp.arange(PACK, dtype=jnp.int32) * TAB_PAD)[None, :, None]
    idx_packed = (idx.reshape(n_pack, PACK, N_TABLES) + tok_off
                  ).reshape(n_pack, IDX_COLS)
    # Pad index columns to a sublane multiple; extra columns hit all-zero
    # selector rows and contribute nothing.
    idx_packed = jnp.pad(idx_packed, ((0, 0), (0, IDX_PAD - IDX_COLS)))

    y_packed = _article_emb_pallas(x_packed, idx_packed, packed, tm4)
    y = y_packed.reshape(n_pad, DIMS)[:n].reshape(*lead, DIMS)
    return y, mask


def article_embedding_reference(params, article, temporal, weekdays, hours):
    embs, cat_embs, premium, sentiment, mask = article
    x = jnp.concatenate([embs, cat_embs], axis=-1)
    h = _selu(x @ params["w1"] + params["b1"][0])
    y = h @ params["w2"] + params["b2"][0]
    y = y + params["premium_embs"][premium]
    y = y + params["sentiment_embs"][sentiment]
    y = y + params["temporal_embs"][temporal]
    y = y + params["weekday_embs"][weekdays]
    y = y + params["hour_embs"][hours]
    return y, mask


# ---------------------------------------------------------------------------
if __name__ == "__main__":
    key = jax.random.PRNGKey(0)
    kp, kx, kc, ki = jax.random.split(key, 4)

    params = init_params(kp)
    packed = pack_params(params)          # one-time constant packing

    embs = jax.random.normal(kx, (BATCH, SEQ, ARTICLE_EMB_SIZE), jnp.float32)
    cat_embs = jax.random.normal(kc, (BATCH, SEQ, CAT_EMB_SIZE), jnp.float32)
    kis = jax.random.split(ki, 5)
    premium = jax.random.randint(kis[0], (BATCH, SEQ), 0, PREMIUM, jnp.int32)
    sentiment = jax.random.randint(kis[1], (BATCH, SEQ), 0, SENTIMENTS, jnp.int32)
    temporal = jax.random.randint(kis[2], (BATCH, SEQ), 0, TEMPORAL, jnp.int32)
    weekdays = jax.random.randint(kis[3], (BATCH, SEQ), 0, WEEKDAYS, jnp.int32)
    hours = jax.random.randint(kis[4], (BATCH, SEQ), 0, HOURS, jnp.int32)
    mask = jnp.ones((BATCH, SEQ), jnp.bool_)

    article = (embs, cat_embs, premium, sentiment, mask)

    out, out_mask = article_embedding_forward(packed, article, temporal,
                                              weekdays, hours)
    out = jax.block_until_ready(out)

    ref, _ = article_embedding_reference(params, article, temporal,
                                         weekdays, hours)
    assert out.shape == (BATCH, SEQ, DIMS)
    assert jnp.allclose(out, ref, atol=1e-5, rtol=1e-5)
    assert bool(jnp.all(out_mask == mask))

    print("KERNEL_OK")
</pallas_src>

<mosaic_0001>
module attributes {stable_mosaic.version = 11 : i64} {
  func.func @_article_emb_kernel(%arg0: i32, %arg1: memref<8x128xf32, #tpu.memory_space<vmem>>, %arg2: memref<8x24xi32, #tpu.memory_space<vmem>>, %arg3: memref<128x128xf32, #tpu.memory_space<vmem>>, %arg4: memref<1x128xf32, #tpu.memory_space<vmem>>, %arg5: memref<128x128xf32, #tpu.memory_space<vmem>>, %arg6: memref<1x128xf32, #tpu.memory_space<vmem>>, %arg7: memref<24x256xf32, #tpu.memory_space<vmem>>, %arg8: memref<1x256xf32, #tpu.memory_space<vmem>>, %arg9: memref<256x128xf32, #tpu.memory_space<vmem>>, %arg10: memref<8x128xf32, #tpu.memory_space<vmem>>) attributes {dimension_semantics = [#tpu.dimension_semantics<parallel>], iteration_bounds = array<i64: 1>, scalar_prefetch = 0 : i64, scratch_operands = 0 : i64, tpu.core_type = #tpu.core_type<tc>, window_params = [{transform_indices = @transform_0, window_bounds = array<i64: 8, 128>}, {transform_indices = @transform_1, window_bounds = array<i64: 8, 24>}, {pipeline_mode = #tpu.pipeline_mode<synchronous>, transform_indices = @transform_2, window_bounds = array<i64: 128, 128>}, {pipeline_mode = #tpu.pipeline_mode<synchronous>, transform_indices = @transform_3, window_bounds = array<i64: 1, 128>}, {pipeline_mode = #tpu.pipeline_mode<synchronous>, transform_indices = @transform_4, window_bounds = array<i64: 128, 128>}, {pipeline_mode = #tpu.pipeline_mode<synchronous>, transform_indices = @transform_5, window_bounds = array<i64: 1, 128>}, {pipeline_mode = #tpu.pipeline_mode<synchronous>, transform_indices = @transform_6, window_bounds = array<i64: 24, 256>}, {pipeline_mode = #tpu.pipeline_mode<synchronous>, transform_indices = @transform_7, window_bounds = array<i64: 1, 256>}, {pipeline_mode = #tpu.pipeline_mode<synchronous>, transform_indices = @transform_8, window_bounds = array<i64: 256, 128>}, {transform_indices = @transform_9, window_bounds = array<i64: 8, 128>}]} {
    %c0 = arith.constant 0 : index
    %c0_0 = arith.constant 0 : index
    %0 = vector.load %arg1[%c0, %c0_0] : memref<8x128xf32, #tpu.memory_space<vmem>>, vector<8x128xf32>
    %c0_1 = arith.constant 0 : index
    %c0_2 = arith.constant 0 : index
    %1 = vector.load %arg3[%c0_1, %c0_2] : memref<128x128xf32, #tpu.memory_space<vmem>>, vector<128x128xf32>
    %cst = arith.constant dense<0.000000e+00> : vector<8x128xf32>
    %2 = tpu.matmul %0, %1, %cst {dimension_numbers = #tpu.dot_dimension_numbers<[1], [0], [0], [1], [0, 0, 1, 1], [], []>} : vector<8x128xf32>, vector<128x128xf32>, vector<8x128xf32> -> vector<8x128xf32>
    %c0_3 = arith.constant 0 : index
    %c0_4 = arith.constant 0 : index
    %3 = vector.load %arg4[%c0_3, %c0_4] : memref<1x128xf32, #tpu.memory_space<vmem>>, vector<1x128xf32>
    %4 = vector.broadcast %3 : vector<1x128xf32> to vector<8x128xf32>
    %5 = arith.addf %2, %4 : vector<8x128xf32>
    %cst_5 = arith.constant 0.000000e+00 : f32
    %6 = vector.broadcast %cst_5 : f32 to vector<8x128xf32>
    %7 = arith.cmpf ogt, %5, %6 : vector<8x128xf32>
    %8 = math.exp %5 : vector<8x128xf32>
    %cst_6 = arith.constant 1.000000e+00 : f32
    %9 = vector.broadcast %cst_6 : f32 to vector<8x128xf32>
    %10 = arith.subf %8, %9 : vector<8x128xf32>
    %cst_7 = arith.constant 1.67326319 : f32
    %11 = vector.broadcast %cst_7 : f32 to vector<8x128xf32>
    %12 = arith.mulf %11, %10 : vector<8x128xf32>
    %13 = arith.select %7, %5, %12 : vector<8x128xi1>, vector<8x128xf32>
    %cst_8 = arith.constant 1.05070102 : f32
    %14 = vector.broadcast %cst_8 : f32 to vector<8x128xf32>
    %15 = arith.mulf %14, %13 : vector<8x128xf32>
    %c0_9 = arith.constant 0 : index
    %c0_10 = arith.constant 0 : index
    %16 = vector.load %arg5[%c0_9, %c0_10] : memref<128x128xf32, #tpu.memory_space<vmem>>, vector<128x128xf32>
    %cst_11 = arith.constant dense<0.000000e+00> : vector<8x128xf32>
    %17 = tpu.matmul %15, %16, %cst_11 {dimension_numbers = #tpu.dot_dimension_numbers<[1], [0], [0], [1], [0, 0, 1, 1], [], []>} : vector<8x128xf32>, vector<128x128xf32>, vector<8x128xf32> -> vector<8x128xf32>
    %c0_12 = arith.constant 0 : index
    %c0_13 = arith.constant 0 : index
    %18 = vector.load %arg6[%c0_12, %c0_13] : memref<1x128xf32, #tpu.memory_space<vmem>>, vector<1x128xf32>
    %19 = vector.broadcast %18 : vector<1x128xf32> to vector<8x128xf32>
    %20 = arith.addf %17, %19 : vector<8x128xf32>
    %c0_14 = arith.constant 0 : index
    %c0_15 = arith.constant 0 : index
    %21 = vector.load %arg2[%c0_14, %c0_15] : memref<8x24xi32, #tpu.memory_space<vmem>>, vector<8x24xi32>
    %22 = arith.sitofp %21 : vector<8x24xi32> to vector<8x24xf32>
    %c0_16 = arith.constant 0 : index
    %c0_17 = arith.constant 0 : index
    %23 = vector.load %arg7[%c0_16, %c0_17] : memref<24x256xf32, #tpu.memory_space<vmem>>, vector<24x256xf32>
    %cst_18 = arith.constant dense<0.000000e+00> : vector<8x256xf32>
    %24 = tpu.matmul %22, %23, %cst_18 {dimension_numbers = #tpu.dot_dimension_numbers<[1], [0], [0], [1], [0, 0, 1, 1], [], []>} : vector<8x24xf32>, vector<24x256xf32>, vector<8x256xf32> -> vector<8x256xf32>
    %c0_19 = arith.constant 0 : index
    %c0_20 = arith.constant 0 : index
    %25 = vector.load %arg8[%c0_19, %c0_20] : memref<1x256xf32, #tpu.memory_space<vmem>>, vector<1x256xf32>
    %26 = vector.broadcast %25 : vector<1x256xf32> to vector<8x256xf32>
    %27 = arith.cmpf oeq, %24, %26 : vector<8x256xf32>
    %28 = arith.extui %27 : vector<8x256xi1> to vector<8x256xi32>
    %29 = arith.sitofp %28 : vector<8x256xi32> to vector<8x256xf32>
    %c0_21 = arith.constant 0 : index
    %c0_22 = arith.constant 0 : index
    %30 = vector.load %arg9[%c0_21, %c0_22] : memref<256x128xf32, #tpu.memory_space<vmem>>, vector<256x128xf32>
    %cst_23 = arith.constant dense<0.000000e+00> : vector<8x128xf32>
    %31 = tpu.matmul %29, %30, %cst_23 {dimension_numbers = #tpu.dot_dimension_numbers<[1], [0], [0], [1], [0, 0, 1, 1], [], []>} : vector<8x256xf32>, vector<256x128xf32>, vector<8x128xf32> -> vector<8x128xf32>
    %32 = arith.addf %20, %31 : vector<8x128xf32>
    %c0_24 = arith.constant 0 : index
    %c0_25 = arith.constant 0 : index
    %33 = vector.load %arg10[%c0_24, %c0_25] : memref<8x128xf32, #tpu.memory_space<vmem>>, vector<8x128xf32>
    tpu.vector_store %arg10[%c0_24, %c0_25], %32 {strides = array<i32>} : memref<8x128xf32, #tpu.memory_space<vmem>>, vector<8x128xf32>,
    return
  }
  func.func @transform_0(%arg0: i32) -> (i32, i32) {
    %c0_i32 = arith.constant 0 : i32
    %c0_i32_0 = arith.constant 0 : i32
    return %arg0, %c0_i32 : i32, i32
  }
  func.func @transform_1(%arg0: i32) -> (i32, i32) {
    %c0_i32 = arith.constant 0 : i32
    %c0_i32_0 = arith.constant 0 : i32
    return %arg0, %c0_i32 : i32, i32
  }
  func.func @transform_2(%arg0: i32) -> (i32, i32) {
    %c0_i32 = arith.constant 0 : i32
    %c0_i32_0 = arith.constant 0 : i32
    %c0_i32_1 = arith.constant 0 : i32
    return %c0_i32, %c0_i32_0 : i32, i32
  }
  func.func @transform_3(%arg0: i32) -> (i32, i32) {
    %c0_i32 = arith.constant 0 : i32
    %c0_i32_0 = arith.constant 0 : i32
    %c0_i32_1 = arith.constant 0 : i32
    return %c0_i32, %c0_i32_0 : i32, i32
  }
  func.func @transform_4(%arg0: i32) -> (i32, i32) {
    %c0_i32 = arith.constant 0 : i32
    %c0_i32_0 = arith.constant 0 : i32
    %c0_i32_1 = arith.constant 0 : i32
    return %c0_i32, %c0_i32_0 : i32, i32
  }
  func.func @transform_5(%arg0: i32) -> (i32, i32) {
    %c0_i32 = arith.constant 0 : i32
    %c0_i32_0 = arith.constant 0 : i32
    %c0_i32_1 = arith.constant 0 : i32
    return %c0_i32, %c0_i32_0 : i32, i32
  }
  func.func @transform_6(%arg0: i32) -> (i32, i32) {
    %c0_i32 = arith.constant 0 : i32
    %c0_i32_0 = arith.constant 0 : i32
    %c0_i32_1 = arith.constant 0 : i32
    return %c0_i32, %c0_i32_0 : i32, i32
  }
  func.func @transform_7(%arg0: i32) -> (i32, i32) {
    %c0_i32 = arith.constant 0 : i32
    %c0_i32_0 = arith.constant 0 : i32
    %c0_i32_1 = arith.constant 0 : i32
    return %c0_i32, %c0_i32_0 : i32, i32
  }
  func.func @transform_8(%arg0: i32) -> (i32, i32) {
    %c0_i32 = arith.constant 0 : i32
    %c0_i32_0 = arith.constant 0 : i32
    %c0_i32_1 = arith.constant 0 : i32
    return %c0_i32, %c0_i32_0 : i32, i32
  }
  func.func @transform_9(%arg0: i32) -> (i32, i32) {
    %c0_i32 = arith.constant 0 : i32
    %c0_i32_0 = arith.constant 0 : i32
    return %arg0, %c0_i32 : i32, i32
  }
}

</mosaic_0001>

<llo_original>
// kernel: article_embedding_forward.1
$region0: #{article_embedding_forward.1}
  #allocation0 [shape = 'u32[]', space=smem, size = 0x4, offset = 0x4, fixed_abs, tag = 'smem constant byte address 0x4 - core index']
  #allocation1 [shape = 'u32[72,128]{1,0:T(1,128)}', space=vmem, size = 0x9000, scoped, tag = 'internal scratch']
  %s0 = inlined_call_operand.vmem [shape: f32[8,128], index: 0, kind: input, shape index: {}]
  %s1 = inlined_call_operand.vmem [shape: s32[8,24], index: 1, kind: input, shape index: {}]
  %s2 = inlined_call_operand.vmem [shape: f32[128,128], index: 2, kind: input, shape index: {}]
  %s3 = inlined_call_operand.vmem [shape: f32[1,128], index: 3, kind: input, shape index: {}]
  %s4 = inlined_call_operand.vmem [shape: f32[128,128], index: 4, kind: input, shape index: {}]
  %s5 = inlined_call_operand.vmem [shape: f32[1,128], index: 5, kind: input, shape index: {}]
  %s6 = inlined_call_operand.hbm [shape: f32[24,256], index: 6, kind: input, shape index: {}]
  %s7 = inlined_call_operand.vmem [shape: f32[1,256], index: 7, kind: input, shape index: {}]
  %s8 = inlined_call_operand.hbm [shape: f32[256,128], index: 8, kind: input, shape index: {}]
  %s9 = inlined_call_operand.vmem [shape: f32[8,128], index: 9, kind: output, shape index: {}]
  %s10 = sld [smem:[#allocation0]]
  $region54: #{article_embedding_forward.1} parent=0
    _
  %s12 = ssub.s32 1, %s10
  %s13 = scalar_select 0, %s12, %s10
  $region1: #{article_embedding_forward.1} parent=0
    #allocation2 [shape = 'u8[24576]{0}', space=vmem, size = 0x6000, scoped, tag = 'input window, operand 6, single buffered']
    #allocation3 [shape = 's32[1]{0}', space=sflag, size = 0x4, scoped, tag = 'scoped memory for article_embedding_forward.1']
    #allocation4 [shape = 'u8[131072]{0}', space=vmem, size = 0x20000, scoped, tag = 'input window, operand 8, single buffered']
    #allocation5 [shape = 's32[1]{0}', space=sflag, size = 0x4, scoped, tag = 'scoped memory for article_embedding_forward.1']
    %14 = vsyncpa [#allocation3], 0
    %15 = vsyncpa [#allocation5], 0
    // Predicated region
    $region2: #{article_embedding_forward.1} parent=1 // pred_check
      _
    $region3: #{article_embedding_forward.1} parent=1 // pred_check_branch
      %17 = sbr.rel (0) target = $region5
    $region4: #{article_embedding_forward.1} parent=1 // pred_region
      _
    $region5: #{article_embedding_forward.1} parent=1 // pred_fallthru
      _
    // Predicated region
    $region6: #{article_embedding_forward.1} parent=1 // pred_check
      _
    $region7: #{article_embedding_forward.1} parent=1 // pred_check_branch
      %19 = sbr.rel (0) target = $region9
    $region8: #{article_embedding_forward.1} parent=1 // pred_region
      _
    $region9: #{article_embedding_forward.1} parent=1 // pred_fallthru
      _
    // Predicated region
    $region10: #{article_embedding_forward.1} parent=1 // pred_check
      _
    $region11: #{article_embedding_forward.1} parent=1 // pred_check_branch
      %21 = sbr.rel (0) target = $region13
    $region12: #{article_embedding_forward.1} parent=1 // pred_region
      _
    $region13: #{article_embedding_forward.1} parent=1 // pred_fallthru
      _
    // Predicated region
    $region14: #{article_embedding_forward.1} parent=1 // pred_check
      _
    $region15: #{article_embedding_forward.1} parent=1 // pred_check_branch
      %23 = sbr.rel (0) target = $region17
    $region16: #{article_embedding_forward.1} parent=1 // pred_region
      _
    $region17: #{article_embedding_forward.1} parent=1 // pred_fallthru
      _
    // Predicated region
    $region18: #{article_embedding_forward.1} parent=1 // pred_check
      _
    $region19: #{article_embedding_forward.1} parent=1 // pred_check_branch
      %25 = sbr.rel (0) target = $region21
    $region20: #{article_embedding_forward.1} parent=1 // pred_region
      _
    $region21: #{article_embedding_forward.1} parent=1 // pred_fallthru
      _
    // Predicated region
    $region22: #{article_embedding_forward.1} parent=1 // pred_check
      _
    $region23: #{article_embedding_forward.1} parent=1 // pred_check_branch
      %27 = sbr.rel (0) target = $region25
    $region24: #{article_embedding_forward.1} parent=1 // pred_region
      _
    $region25: #{article_embedding_forward.1} parent=1 // pred_fallthru
      _
    // Predicated region
    $region26: #{article_embedding_forward.1} parent=1 // pred_check
      _
    $region27: #{article_embedding_forward.1} parent=1 // pred_check_branch
      %29 = sbr.rel (0) target = $region29
    $region28: #{article_embedding_forward.1} parent=1 // pred_region
      %31 = vsyncadd [#allocation3], 0
      %s32 = sshll.u32 %s6, 4
      %s33 = int_to_ptr.hbm [resolvable:$true] %s32
      %s34 = sshll.u32 [#allocation2], 4
      %s35 = int_to_ptr.vmem [resolvable:$true] %s34
      %40 = dma.hbm_to_vmem [thread:$0]  %s33, 768, %s35, [#allocation3], 256, 256, 16
    $region29: #{article_embedding_forward.1} parent=1 // pred_fallthru
      _
    // Predicated region
    $region30: #{article_embedding_forward.1} parent=1 // pred_check
      _
    $region31: #{article_embedding_forward.1} parent=1 // pred_check_branch
      %42 = sbr.rel (0) target = $region33
    $region32: #{article_embedding_forward.1} parent=1 // pred_region
      _
    $region33: #{article_embedding_forward.1} parent=1 // pred_fallthru
      _
    // Predicated region
    $region34: #{article_embedding_forward.1} parent=1 // pred_check
      _
    $region35: #{article_embedding_forward.1} parent=1 // pred_check_branch
      %44 = sbr.rel (0) target = $region37
    $region36: #{article_embedding_forward.1} parent=1 // pred_region
      %46 = vsyncadd [#allocation5], 0
      %s47 = sshll.u32 %s8, 4
      %s48 = int_to_ptr.hbm [resolvable:$true] %s47
      %s49 = sshll.u32 [#allocation4], 4
      %s50 = int_to_ptr.vmem [resolvable:$true] %s49
      %55 = dma.hbm_to_vmem [thread:$0]  %s48, 4096, %s50, [#allocation5], 128, 128, 8
    $region37: #{article_embedding_forward.1} parent=1 // pred_fallthru
      _
    // Predicated region
    $region38: #{article_embedding_forward.1} parent=1 // pred_check
      _
    $region39: #{article_embedding_forward.1} parent=1 // pred_check_branch
      %57 = sbr.rel (0) target = $region41
    $region40: #{article_embedding_forward.1} parent=1 // pred_region
      %59 = dma.done [#allocation3], 768
    $region41: #{article_embedding_forward.1} parent=1 // pred_fallthru
      _
    // Predicated region
    $region42: #{article_embedding_forward.1} parent=1 // pred_check
      _
    $region43: #{article_embedding_forward.1} parent=1 // pred_check_branch
      %61 = sbr.rel (0) target = $region45
    $region44: #{article_embedding_forward.1} parent=1 // pred_region
      %63 = dma.done [#allocation5], 4096
    $region45: #{article_embedding_forward.1} parent=1 // pred_fallthru
      _
    %v64 = vld [vmem:[%s0] sm:$0xff]
    %v65 = vld [vmem:[%s2] sm:$0xff]
    %v66 = vld [vmem:[%s2 + $0x8] sm:$0xff]
    %v67 = vld [vmem:[%s2 + $0x10] sm:$0xff]
    %v68 = vld [vmem:[%s2 + $0x18] sm:$0xff]
    %v69 = vld [vmem:[%s2 + $0x20] sm:$0xff]
    %v70 = vld [vmem:[%s2 + $0x28] sm:$0xff]
    %v71 = vld [vmem:[%s2 + $0x30] sm:$0xff]
    %v72 = vld [vmem:[%s2 + $0x38] sm:$0xff]
    %v73 = vld [vmem:[%s2 + $0x40] sm:$0xff]
    %v74 = vld [vmem:[%s2 + $0x48] sm:$0xff]
    %v75 = vld [vmem:[%s2 + $0x50] sm:$0xff]
    %v76 = vld [vmem:[%s2 + $0x58] sm:$0xff]
    %v77 = vld [vmem:[%s2 + $0x60] sm:$0xff]
    %v78 = vld [vmem:[%s2 + $0x68] sm:$0xff]
    %v79 = vld [vmem:[%s2 + $0x70] sm:$0xff]
    %v80 = vld [vmem:[%s2 + $0x78] sm:$0xff]
    %v81 = vld [vmem:[%s3] sm:$0x1]
    %v83 = vperm.slane %v81, 0
    %85 = vmatpush.msra.mxu0 %v80
    %86 = vmatpush.msra.mxu0 %v79
    %87 = vmatpush.msra.mxu0 %v78
    %88 = vmatpush.msra.mxu0 %v77
    %89 = vmatpush.msra.mxu0 %v76
    %90 = vmatpush.msra.mxu0 %v75
    %91 = vmatpush.msra.mxu0 %v74
    %92 = vmatpush.msra.mxu0 %v73
    %93 = vmatpush.msra.mxu0 %v72
    %94 = vmatpush.msra.mxu0 %v71
    %95 = vmatpush.msra.mxu0 %v70
    %96 = vmatpush.msra.mxu0 %v69
    %97 = vmatpush.msra.mxu0 %v68
    %98 = vmatpush.msra.mxu0 %v67
    %99 = vmatpush.msra.mxu0 %v66
    %100 = vmatpush.msra.mxu0 %v65
    %101 = vmatmul.f32.gmra.mxu0 %v64
    %v102 = vpop.f32.mrf.mxu0
    %v103 = vadd.f32 %v83, %v102
    %104 = vdwg.mxu0
    %vm105 = vcmp.gt.f32.partialorder %v103, 0.0
    %v106 = vmul.f32 %v103, 1.442695
    %v107 = vpow.pop %v106
    %v108 = vsub.f32 %v107, 1.0
    %v109 = vmul.f32 %v108, 1.6732632
    %v110 = vsel %vm105, %v103, %v109
    %v111 = vmul.f32 %v110, 1.050701
    %v112 = vld [vmem:[%s4] sm:$0xff]
    %v113 = vld [vmem:[%s4 + $0x8] sm:$0xff]
    %v114 = vld [vmem:[%s4 + $0x10] sm:$0xff]
    %v115 = vld [vmem:[%s4 + $0x18] sm:$0xff]
    %v116 = vld [vmem:[%s4 + $0x20] sm:$0xff]
    %v117 = vld [vmem:[%s4 + $0x28] sm:$0xff]
    %v118 = vld [vmem:[%s4 + $0x30] sm:$0xff]
    %v119 = vld [vmem:[%s4 + $0x38] sm:$0xff]
    %v120 = vld [vmem:[%s4 + $0x40] sm:$0xff]
    %v121 = vld [vmem:[%s4 + $0x48] sm:$0xff]
    %v122 = vld [vmem:[%s4 + $0x50] sm:$0xff]
    %v123 = vld [vmem:[%s4 + $0x58] sm:$0xff]
    %v124 = vld [vmem:[%s4 + $0x60] sm:$0xff]
    %v125 = vld [vmem:[%s4 + $0x68] sm:$0xff]
    %v126 = vld [vmem:[%s4 + $0x70] sm:$0xff]
    %v127 = vld [vmem:[%s4 + $0x78] sm:$0xff]
    %v128 = vld [vmem:[%s5] sm:$0x1]
    %v130 = vperm.slane %v128, 0
    %132 = vmatpush.msra.mxu0 %v127
    %133 = vmatpush.msra.mxu0 %v126
    %134 = vmatpush.msra.mxu0 %v125
    %135 = vmatpush.msra.mxu0 %v124
    %136 = vmatpush.msra.mxu0 %v123
    %137 = vmatpush.msra.mxu0 %v122
    %138 = vmatpush.msra.mxu0 %v121
    %139 = vmatpush.msra.mxu0 %v120
    %140 = vmatpush.msra.mxu0 %v119
    %141 = vmatpush.msra.mxu0 %v118
    %142 = vmatpush.msra.mxu0 %v117
    %143 = vmatpush.msra.mxu0 %v116
    %144 = vmatpush.msra.mxu0 %v115
    %145 = vmatpush.msra.mxu0 %v114
    %146 = vmatpush.msra.mxu0 %v113
    %147 = vmatpush.msra.mxu0 %v112
    %148 = vmatmul.f32.gmra.mxu0 %v111
    %v149 = vpop.f32.mrf.mxu0
    %v150 = vadd.f32 %v130, %v149
    %151 = vdwg.mxu0
    %v152 = vld [vmem:[%s1] sm:$0xff]
    %v153 = vcvt.s32.f32 %v152
    %v154 = vld [vmem:[#allocation2] sm:$0xff]
    %v155 = vld [vmem:[#allocation2 + $0x8] sm:$0xff]
    %v156 = vld [vmem:[#allocation2 + $0x10] sm:$0xff]
    %v157 = vld [vmem:[#allocation2 + $0x18] sm:$0xff]
    %v158 = vld [vmem:[#allocation2 + $0x20] sm:$0xff]
    %v159 = vld [vmem:[#allocation2 + $0x28] sm:$0xff]
    %vm160 = vcmask 195584
    %v162 = vsel %vm160, %v153, 0
    %164 = vmatpush.msra.mxu0 0.0
    %165 = vmatpush.msra.mxu0 0.0
    %166 = vmatpush.msra.mxu0 0.0
    %167 = vmatpush.msra.mxu0 0.0
    %168 = vmatpush.msra.mxu0 0.0
    %169 = vmatpush.msra.mxu0 0.0
    %170 = vmatpush.msra.mxu0 0.0
    %171 = vmatpush.msra.mxu0 0.0
    %172 = vmatpush.msra.mxu0 0.0
    %173 = vmatpush.msra.mxu0 0.0
    %174 = vmatpush.msra.mxu0 0.0
    %175 = vmatpush.msra.mxu0 0.0
    %176 = vmatpush.msra.mxu0 0.0
    %177 = vmatpush.msra.mxu0 %v158
    %178 = vmatpush.msra.mxu0 %v156
    %179 = vmatpush.msra.mxu0 %v154
    %180 = vmatmul.f32.gmra.mxu0 %v162
    %v181 = vpop.f32.mrf.mxu0
    %v182 = vadd.f32 0.0, %v181
    %183 = vdwg.mxu0
    %184 = vmatpush.msra.mxu0 0.0
    %185 = vmatpush.msra.mxu0 0.0
    %186 = vmatpush.msra.mxu0 0.0
    %187 = vmatpush.msra.mxu0 0.0
    %188 = vmatpush.msra.mxu0 0.0
    %189 = vmatpush.msra.mxu0 0.0
    %190 = vmatpush.msra.mxu0 0.0
    %191 = vmatpush.msra.mxu0 0.0
    %192 = vmatpush.msra.mxu0 0.0
    %193 = vmatpush.msra.mxu0 0.0
    %194 = vmatpush.msra.mxu0 0.0
    %195 = vmatpush.msra.mxu0 0.0
    %196 = vmatpush.msra.mxu0 0.0
    %197 = vmatpush.msra.mxu0 %v159
    %198 = vmatpush.msra.mxu0 %v157
    %199 = vmatpush.msra.mxu0 %v155
    %200 = vmatmul.f32.gmra.mxu0 %v162
    %v201 = vpop.f32.mrf.mxu0
    %v202 = vadd.f32 0.0, %v201
    %203 = vdwg.mxu0
    %v204 = vld [vmem:[%s7] sm:$0x3]
    %v206 = vperm.slane %v204, 0
    %v207 = vperm.slane %v204, 1
    %vm210 = vcmp.eq.f32.partialorder %v182, %v206
    %vm211 = vcmp.eq.f32.partialorder %v202, %v207
    %v212 = vsel %vm210, 1, 0
    %v213 = vsel %vm211, 1, 0
    %v214 = vcvt.s32.f32 %v212
    %v215 = vcvt.s32.f32 %v213
    %v216 = vld [vmem:[#allocation4] sm:$0xff]
    %v217 = vld [vmem:[#allocation4 + $0x8] sm:$0xff]
    %v218 = vld [vmem:[#allocation4 + $0x10] sm:$0xff]
    %v219 = vld [vmem:[#allocation4 + $0x18] sm:$0xff]
    %v220 = vld [vmem:[#allocation4 + $0x20] sm:$0xff]
    %v221 = vld [vmem:[#allocation4 + $0x28] sm:$0xff]
    %v222 = vld [vmem:[#allocation4 + $0x30] sm:$0xff]
    %v223 = vld [vmem:[#allocation4 + $0x38] sm:$0xff]
    %v224 = vld [vmem:[#allocation4 + $0x40] sm:$0xff]
    %v225 = vld [vmem:[#allocation4 + $0x48] sm:$0xff]
    %v226 = vld [vmem:[#allocation4 + $0x50] sm:$0xff]
    %v227 = vld [vmem:[#allocation4 + $0x58] sm:$0xff]
    %v228 = vld [vmem:[#allocation4 + $0x60] sm:$0xff]
    %v229 = vld [vmem:[#allocation4 + $0x68] sm:$0xff]
    %v230 = vld [vmem:[#allocation4 + $0x70] sm:$0xff]
    %v231 = vld [vmem:[#allocation4 + $0x78] sm:$0xff]
    %v232 = vld [vmem:[#allocation4 + $0x80] sm:$0xff]
    %v233 = vld [vmem:[#allocation4 + $0x88] sm:$0xff]
    %v234 = vld [vmem:[#allocation4 + $0x90] sm:$0xff]
    %v235 = vld [vmem:[#allocation4 + $0x98] sm:$0xff]
    %v236 = vld [vmem:[#allocation4 + $0xa0] sm:$0xff]
    %v237 = vld [vmem:[#allocation4 + $0xa8] sm:$0xff]
    %v238 = vld [vmem:[#allocation4 + $0xb0] sm:$0xff]
    %v239 = vld [vmem:[#allocation4 + $0xb8] sm:$0xff]
    %v240 = vld [vmem:[#allocation4 + $0xc0] sm:$0xff]
    %v241 = vld [vmem:[#allocation4 + $0xc8] sm:$0xff]
    %v242 = vld [vmem:[#allocation4 + $0xd0] sm:$0xff]
    %v243 = vld [vmem:[#allocation4 + $0xd8] sm:$0xff]
    %v244 = vld [vmem:[#allocation4 + $0xe0] sm:$0xff]
    %v245 = vld [vmem:[#allocation4 + $0xe8] sm:$0xff]
    %v246 = vld [vmem:[#allocation4 + $0xf0] sm:$0xff]
    %v247 = vld [vmem:[#allocation4 + $0xf8] sm:$0xff]
    %248 = vmatpush.msra.mxu0 %v231
    %249 = vmatpush.msra.mxu0 %v230
    %250 = vmatpush.msra.mxu0 %v229
    %251 = vmatpush.msra.mxu0 %v228
    %252 = vmatpush.msra.mxu0 %v227
    %253 = vmatpush.msra.mxu0 %v226
    %254 = vmatpush.msra.mxu0 %v225
    %255 = vmatpush.msra.mxu0 %v224
    %256 = vmatpush.msra.mxu0 %v223
    %257 = vmatpush.msra.mxu0 %v222
    %258 = vmatpush.msra.mxu0 %v221
    %259 = vmatpush.msra.mxu0 %v220
    %260 = vmatpush.msra.mxu0 %v219
    %261 = vmatpush.msra.mxu0 %v218
    %262 = vmatpush.msra.mxu0 %v217
    %263 = vmatpush.msra.mxu0 %v216
    %264 = vmatmul.f32.gmra.mxu0 %v214
    %v265 = vpop.f32.mrf.mxu0
    %v266 = vadd.f32 0.0, %v265
    %267 = vdwg.mxu0
    %268 = vmatpush.msra.mxu0 %v247
    %269 = vmatpush.msra.mxu0 %v246
    %270 = vmatpush.msra.mxu0 %v245
    %271 = vmatpush.msra.mxu0 %v244
    %272 = vmatpush.msra.mxu0 %v243
    %273 = vmatpush.msra.mxu0 %v242
    %274 = vmatpush.msra.mxu0 %v241
    %275 = vmatpush.msra.mxu0 %v240
    %276 = vmatpush.msra.mxu0 %v239
    %277 = vmatpush.msra.mxu0 %v238
    %278 = vmatpush.msra.mxu0 %v237
    %279 = vmatpush.msra.mxu0 %v236
    %280 = vmatpush.msra.mxu0 %v235
    %281 = vmatpush.msra.mxu0 %v234
    %282 = vmatpush.msra.mxu0 %v233
    %283 = vmatpush.msra.mxu0 %v232
    %284 = vmatmul.f32.gmra.mxu0 %v215
    %v285 = vpop.f32.mrf.mxu0
    %v286 = vadd.f32 %v266, %v285
    %287 = vdwg.mxu0
    %v288 = vadd.f32 %v150, %v286
    %289 = vst [vmem:[%s9] sm:$0xff] %v288
    // Predicated region
    $region46: #{article_embedding_forward.1} parent=1 // pred_check
      _
    $region47: #{article_embedding_forward.1} parent=1 // pred_check_branch
      %291 = sbr.rel (0) target = $region49
    $region48: #{article_embedding_forward.1} parent=1 // pred_region
      _
    $region49: #{article_embedding_forward.1} parent=1 // pred_fallthru
      _
    // Predicated region
    $region50: #{article_embedding_forward.1} parent=1 // pred_check
      _
    $region51: #{article_embedding_forward.1} parent=1 // pred_check_branch
      %293 = sbr.rel (0) target = $region53
    $region52: #{article_embedding_forward.1} parent=1 // pred_region
      _
    $region53: #{article_embedding_forward.1} parent=1 // pred_fallthru
      _
    %294 = vsyncpa [#allocation3], 1
    %295 = vsyncpa [#allocation5], 1

</llo_original>
